<compile_context>
chip_gen: v5e
topology: v5e:2x2
jax: 0.10.0
libtpu: 0.0.40
codegen_flags: <defaults>
</compile_context>

<pallas_src>
import functools

import jax
import jax.numpy as jnp
from jax import lax
from jax.experimental import pallas as pl
from jax.experimental.pallas import tpu as pltpu

LEAKY_SLOPE = 0.2
BN_EPS = 1e-5


def _leaky(x):
    return jnp.where(x > 0, x, LEAKY_SLOPE * x)


# --------------------------------- kernel -----------------------------------

def resblock_kernel(x_ref, pp_ref, w1_ref, w2_ref, *rest,
                    K, pad, out_act, project, matmul_dtype):
    """Fused ResBlockTranspose forward for one batch block (NCL layout).

      x_ref : (nb, Cin, L)    f32 input block (channels on sublanes, L on lanes)
      pp_ref: (Cmax, 6)       f32 packed per-channel params
                              cols = [bn1_s, bn1_t, bn2_s, bn2_t, b1, b2(+bp)]
      w1_ref: (K, Cout, Cin)  matmul_dtype tap-major convT1 weights
      w2_ref: (K, Cout, Cout) matmul_dtype tap-major convT2 weights
      wp_ref: (Cout, Cin)     matmul_dtype 1x1 projection (only when project)
      out   : (nb, Cout, L)   f32
    """
    if project:
        wp_ref, out_ref = rest
    else:
        (out_ref,) = rest

    nb, Cin, L = x_ref.shape
    Cout = out_ref.shape[1]

    pp = pp_ref[...]
    bn1_s, bn1_t = pp[:Cin, 0:1], pp[:Cin, 1:2]
    bn2_s, bn2_t = pp[:Cout, 2:3], pp[:Cout, 3:4]
    b1, b2 = pp[:Cout, 4:5], pp[:Cout, 5:6]       # b2 already has bp folded in

    w1 = w1_ref[...]
    w2 = w2_ref[...]
    wp = wp_ref[...] if project else None

    # Lane position within a sample.  Each block holds whole samples along L,
    # so boundary taps only need masking, never a halo.
    t_idx = lax.broadcasted_iota(jnp.int32, (1, L), 1)

    def conv_transpose_s1(h_f32, w_taps, bias_col, extra=None):
        """Stride-1 ConvTranspose1d as K accumulating MXU dots, f32 accumulate.

        out[o, t] = sum_k sum_i w_taps[k, o, i] * h[i, t + pad - k]
                    (0 outside [0, L))            (+ optional fused 1x1 dot)
        """
        h = h_f32.astype(matmul_dtype)
        acc = jnp.zeros((Cout, L), jnp.float32)
        for k in range(K):                        # static, small K
            lo = k - pad
            if lo == 0:
                tap = h
            else:
                # Static roll (slice+concat); wrapped values are masked off.
                shifted = jnp.roll(h, lo, axis=1)
                mask = (t_idx >= lo) & (t_idx < L + lo)
                tap = jnp.where(mask, shifted, 0.0)
            acc = acc + jnp.dot(w_taps[k], tap,
                                preferred_element_type=jnp.float32)
        if extra is not None:                     # fused residual projection
            ew, ex = extra
            acc = acc + jnp.dot(ew, ex, preferred_element_type=jnp.float32)
        return acc + bias_col

    for b in range(nb):                           # static unroll over batch block
        x = x_ref[b]                              # (Cin, L) f32

        # bn1 -> leaky -> (dropout p=0.05 is identity in eval) -> convT1
        h1 = _leaky(x * bn1_s + bn1_t)
        y = conv_transpose_s1(h1, w1, b1)         # (Cout, L)

        # bn2 -> leaky -> convT2 (+ fused 1x1 projection of the residual)
        h2 = _leaky(y * bn2_s + bn2_t)
        if project:
            y = conv_transpose_s1(h2, w2, b2,
                                  extra=(wp, x.astype(matmul_dtype)))
        else:
            y = conv_transpose_s1(h2, w2, b2) + x

        if out_act:
            y = _leaky(y)
        out_ref[b] = y.astype(out_ref.dtype)


# --------------------------- parameter preparation --------------------------

def prepare_params(params, *, in_channels, out_channels, kernel_size,
                   matmul_dtype=jnp.bfloat16):
    """One-time packing of weights/params into the kernel's layout."""
    K = kernel_size
    Cmax = max(in_channels, out_channels)
    project = in_channels != out_channels

    b2_total = params["b2"] + (params["bp"] if project else 0.0)

    def padded(v):
        return jnp.pad(v, (0, Cmax - v.shape[0]))

    pp = jnp.stack([
        padded(params["bn1_scale"]), padded(params["bn1_shift"]),
        padded(params["bn2_scale"]), padded(params["bn2_shift"]),
        padded(params["b1"]), padded(b2_total),
    ], axis=1).astype(jnp.float32)                         # (Cmax, 6)

    # PyTorch ConvTranspose1d weight layout: (Cin, Cout, K) -> taps (K, Cout, Cin).
    w1 = jnp.transpose(params["w1_torch"], (2, 1, 0)).astype(matmul_dtype)
    w2 = jnp.transpose(params["w2_torch"], (2, 1, 0)).astype(matmul_dtype)

    packed = {"pp": pp, "w1": w1, "w2": w2}
    if project:
        packed["wp"] = jnp.transpose(
            params["wp_torch"][:, :, 0]).astype(matmul_dtype)   # (Cout, Cin)
    return packed


# --------------------------------- wrapper ----------------------------------

def resblock_transpose_pallas(x_ncl, packed, *, kernel_size, padding,
                              out_act=True, batch_block=1,
                              matmul_dtype=jnp.bfloat16):
    """x_ncl: (N, Cin, L) float32 (PyTorch NCL).  Returns (N, Cout, L) float32."""
    N, Cin, L = x_ncl.shape
    K = kernel_size
    if not (0 <= padding <= K - 1):
        raise ValueError("kernel assumes 0 <= padding <= kernel_size - 1")
    if 2 * padding != K - 1:
        raise ValueError("residual add requires stride=1 and 2*padding == "
                         "kernel_size-1 so output length equals input length")
    nb = batch_block
    if N % nb != 0:
        raise ValueError("batch_block must divide N")

    Cout = packed["w1"].shape[1]
    project = Cin != Cout

    kern = functools.partial(
        resblock_kernel, K=K, pad=padding, out_act=out_act,
        project=project, matmul_dtype=matmul_dtype)

    args = [x_ncl, packed["pp"], packed["w1"], packed["w2"]]
    in_specs = [
        pl.BlockSpec((nb, Cin, L), lambda n: (n, 0, 0)),        # x block (NCL)
        pl.BlockSpec(packed["pp"].shape, lambda n: (0, 0)),     # packed params
        pl.BlockSpec(packed["w1"].shape, lambda n: (0, 0, 0)),  # convT1 taps
        pl.BlockSpec(packed["w2"].shape, lambda n: (0, 0, 0)),  # convT2 taps
    ]
    if project:
        args.append(packed["wp"])
        in_specs.append(pl.BlockSpec(packed["wp"].shape, lambda n: (0, 0)))

    # Advisory cost for XLA scheduling around the custom call.
    flops = (2 * N * L * (K * Cin * Cout + K * Cout * Cout
                          + (Cin * Cout if project else 0))
             + 8 * N * L * (Cin + Cout))
    weight_bytes = sum(int(a.size) * a.dtype.itemsize for a in args[1:])
    bytes_accessed = 4 * N * L * (Cin + Cout) + weight_bytes
    cost = pl.CostEstimate(flops=int(flops), transcendentals=0,
                           bytes_accessed=int(bytes_accessed))

    out = pl.pallas_call(
        kern,
        out_shape=jax.ShapeDtypeStruct((N, Cout, L), jnp.float32),
        grid=(N // nb,),
        in_specs=in_specs,
        out_specs=pl.BlockSpec((nb, Cout, L), lambda n: (n, 0, 0)),
        compiler_params=pltpu.CompilerParams(
            # independent samples -> megacore sharding on v7x's 2 TCs
            dimension_semantics=("parallel",),
            # 32 MiB scoped VMEM: within physical budget on v5e/v6e (128 MiB)
            # and v7x (64 MiB); tiles here are tiny so this is pure headroom.
            vmem_limit_bytes=32 * 1024 * 1024,
        ),
        cost_estimate=cost,
    )(*args)
    return out                                               # (N, Cout, L)


# ---------------- deterministic parameter init (synthetic) ------------------

def init_params(key, in_channels, out_channels, kernel_size):
    ks = jax.random.split(key, 16)

    def bn_affine(kg, kb, km, kv, c):
        gamma = 1.0 + 0.1 * jax.random.normal(kg, (c,), jnp.float32)
        beta = 0.1 * jax.random.normal(kb, (c,), jnp.float32)
        mean = 0.1 * jax.random.normal(km, (c,), jnp.float32)
        var = 1.0 + 0.1 * jnp.abs(jax.random.normal(kv, (c,), jnp.float32))
        scale = gamma / jnp.sqrt(var + BN_EPS)
        shift = beta - mean * scale
        return scale, shift

    s1, t1 = bn_affine(ks[0], ks[1], ks[2], ks[3], in_channels)
    s2, t2 = bn_affine(ks[4], ks[5], ks[6], ks[7], out_channels)

    p = {
        "bn1_scale": s1, "bn1_shift": t1,
        "bn2_scale": s2, "bn2_shift": t2,
        # PyTorch ConvTranspose1d weight layout: (Cin, Cout, K)
        "w1_torch": 0.1 * jax.random.normal(
            ks[8], (in_channels, out_channels, kernel_size), jnp.float32),
        "b1": 0.1 * jax.random.normal(ks[9], (out_channels,), jnp.float32),
        "w2_torch": 0.1 * jax.random.normal(
            ks[10], (out_channels, out_channels, kernel_size), jnp.float32),
        "b2": 0.1 * jax.random.normal(ks[11], (out_channels,), jnp.float32),
    }
    if in_channels != out_channels:
        p["wp_torch"] = 0.1 * jax.random.normal(
            ks[12], (in_channels, out_channels, 1), jnp.float32)
        p["bp"] = 0.1 * jax.random.normal(ks[13], (out_channels,), jnp.float32)
    return p


# ---------------- pure-JAX reference (direct transpose-conv definition) -----

def _conv_transpose1d_ref(x_ncl, w_iok, bias, pad):
    N, Cin, L = x_ncl.shape
    Cout, K = w_iok.shape[1], w_iok.shape[2]
    full = jnp.zeros((N, Cout, L + K - 1), jnp.float32)
    for k in range(K):
        full = full.at[:, :, k:k + L].add(
            jnp.einsum("ncl,co->nol", x_ncl, w_iok[:, :, k]))
    out = full[:, :, pad:pad + (L + K - 1 - 2 * pad)]
    return out + bias[None, :, None]


def resblock_ref(x_ncl, params, *, kernel_size, padding, out_act=True):
    def bn(x, scale, shift):
        return x * scale[None, :, None] + shift[None, :, None]

    project = "wp_torch" in params
    y = _leaky(bn(x_ncl, params["bn1_scale"], params["bn1_shift"]))
    y = _conv_transpose1d_ref(y, params["w1_torch"], params["b1"], padding)
    y = _leaky(bn(y, params["bn2_scale"], params["bn2_shift"]))
    y = _conv_transpose1d_ref(y, params["w2_torch"], params["b2"], padding)
    y0 = (_conv_transpose1d_ref(x_ncl, params["wp_torch"], params["bp"], 0)
          if project else x_ncl)
    y = y + y0
    if out_act:
        y = _leaky(y)
    return y


if __name__ == "__main__":
    # Module instantiation: ResBlockTranspose(in=4, out=8, kernel_size=3,
    #                                         stride=1, padding=1)
    N, Cin, Cout, L = 2, 4, 8, 16
    K, pad = 3, 1

    key = jax.random.PRNGKey(0)
    k_x, k_p = jax.random.split(key)
    x_ncl = jax.random.normal(k_x, (N, Cin, L), jnp.float32)   # PyTorch NCL input
    params = init_params(k_p, Cin, Cout, K)
    ref_ncl = resblock_ref(x_ncl, params, kernel_size=K, padding=pad, out_act=True)

    # 1) f32 matmul operands: exact check against the reference.
    packed_f32 = prepare_params(params, in_channels=Cin, out_channels=Cout,
                                kernel_size=K, matmul_dtype=jnp.float32)
    out_f32 = resblock_transpose_pallas(x_ncl, packed_f32, kernel_size=K,
                                        padding=pad, out_act=True,
                                        matmul_dtype=jnp.float32)
    out_f32 = jax.block_until_ready(out_f32)
    assert out_f32.shape == (N, Cout, L)
    assert jnp.allclose(out_f32, ref_ncl, atol=1e-4, rtol=1e-4), "f32 mismatch"

    # 2) bf16 matmul operands (MXU-native), f32 accumulation: loose tolerance.
    packed_bf16 = prepare_params(params, in_channels=Cin, out_channels=Cout,
                                 kernel_size=K, matmul_dtype=jnp.bfloat16)
    out_bf16 = resblock_transpose_pallas(x_ncl, packed_bf16, kernel_size=K,
                                         padding=pad, out_act=True,
                                         matmul_dtype=jnp.bfloat16)
    out_bf16 = jax.block_until_ready(out_bf16)
    assert out_bf16.shape == (N, Cout, L)
    assert jnp.allclose(out_bf16, ref_ncl, atol=5e-2, rtol=5e-2), "bf16 mismatch"

    print("KERNEL_OK")
</pallas_src>

<mosaic_0001>
module attributes {stable_mosaic.version = 11 : i64} {
  func.func @resblock_kernel(%arg0: i32, %arg1: memref<1x4x16xf32, #tpu.memory_space<vmem>>, %arg2: memref<8x6xf32, #tpu.memory_space<vmem>>, %arg3: memref<3x8x4xf32, #tpu.memory_space<vmem>>, %arg4: memref<3x8x8xf32, #tpu.memory_space<vmem>>, %arg5: memref<8x4xf32, #tpu.memory_space<vmem>>, %arg6: memref<1x8x16xf32, #tpu.memory_space<vmem>>) attributes {dimension_semantics = [#tpu.dimension_semantics<parallel>], iteration_bounds = array<i64: 2>, scalar_prefetch = 0 : i64, scratch_operands = 0 : i64, tpu.core_type = #tpu.core_type<tc>, window_params = [{transform_indices = @transform_0, window_bounds = array<i64: 1, 4, 16>}, {pipeline_mode = #tpu.pipeline_mode<synchronous>, transform_indices = @transform_1, window_bounds = array<i64: 8, 6>}, {pipeline_mode = #tpu.pipeline_mode<synchronous>, transform_indices = @transform_2, window_bounds = array<i64: 3, 8, 4>}, {pipeline_mode = #tpu.pipeline_mode<synchronous>, transform_indices = @transform_3, window_bounds = array<i64: 3, 8, 8>}, {pipeline_mode = #tpu.pipeline_mode<synchronous>, transform_indices = @transform_4, window_bounds = array<i64: 8, 4>}, {transform_indices = @transform_5, window_bounds = array<i64: 1, 8, 16>}]} {
    %c0 = arith.constant 0 : index
    %c0_0 = arith.constant 0 : index
    %0 = vector.load %arg2[%c0, %c0_0] : memref<8x6xf32, #tpu.memory_space<vmem>>, vector<8x6xf32>
    %1 = vector.extract_strided_slice %0 {offsets = [0, 0], sizes = [4, 1], strides = [1, 1]} : vector<8x6xf32> to vector<4x1xf32>
    %2 = vector.extract_strided_slice %0 {offsets = [0, 1], sizes = [4, 1], strides = [1, 1]} : vector<8x6xf32> to vector<4x1xf32>
    %3 = vector.extract_strided_slice %0 {offsets = [0, 2], sizes = [8, 1], strides = [1, 1]} : vector<8x6xf32> to vector<8x1xf32>
    %4 = vector.extract_strided_slice %0 {offsets = [0, 3], sizes = [8, 1], strides = [1, 1]} : vector<8x6xf32> to vector<8x1xf32>
    %5 = vector.extract_strided_slice %0 {offsets = [0, 4], sizes = [8, 1], strides = [1, 1]} : vector<8x6xf32> to vector<8x1xf32>
    %6 = vector.extract_strided_slice %0 {offsets = [0, 5], sizes = [8, 1], strides = [1, 1]} : vector<8x6xf32> to vector<8x1xf32>
    %c0_1 = arith.constant 0 : index
    %c0_2 = arith.constant 0 : index
    %c0_3 = arith.constant 0 : index
    %7 = vector.load %arg3[%c0_1, %c0_2, %c0_3] : memref<3x8x4xf32, #tpu.memory_space<vmem>>, vector<3x8x4xf32>
    %c0_4 = arith.constant 0 : index
    %c0_5 = arith.constant 0 : index
    %c0_6 = arith.constant 0 : index
    %8 = vector.load %arg4[%c0_4, %c0_5, %c0_6] : memref<3x8x8xf32, #tpu.memory_space<vmem>>, vector<3x8x8xf32>
    %c0_7 = arith.constant 0 : index
    %c0_8 = arith.constant 0 : index
    %9 = vector.load %arg5[%c0_7, %c0_8] : memref<8x4xf32, #tpu.memory_space<vmem>>, vector<8x4xf32>
    %10 = tpu.iota {dimensions = array<i32: 1>} : vector<1x16xi32>
    %c0_9 = arith.constant 0 : index
    %c0_10 = arith.constant 0 : index
    %c0_11 = arith.constant 0 : index
    %11 = vector.load %arg1[%c0_9, %c0_10, %c0_11] : memref<1x4x16xf32, #tpu.memory_space<vmem>>, vector<1x4x16xf32>
    %12 = vector.shape_cast %11 : vector<1x4x16xf32> to vector<4x16xf32>
    %13 = vector.broadcast %1 : vector<4x1xf32> to vector<4x16xf32>
    %14 = arith.mulf %12, %13 : vector<4x16xf32>
    %15 = vector.broadcast %2 : vector<4x1xf32> to vector<4x16xf32>
    %16 = arith.addf %14, %15 : vector<4x16xf32>
    %cst = arith.constant 0.000000e+00 : f32
    %17 = vector.broadcast %cst : f32 to vector<4x16xf32>
    %18 = arith.cmpf ogt, %16, %17 : vector<4x16xf32>
    %cst_12 = arith.constant 2.000000e-01 : f32
    %19 = vector.broadcast %cst_12 : f32 to vector<4x16xf32>
    %20 = arith.mulf %19, %16 : vector<4x16xf32>
    %21 = arith.select %18, %16, %20 : vector<4x16xi1>, vector<4x16xf32>
    %cst_13 = arith.constant 0.000000e+00 : f32
    %22 = vector.broadcast %cst_13 : f32 to vector<8x16xf32>
    %23 = vector.extract_strided_slice %21 {offsets = [0, 1], sizes = [4, 15], strides = [1, 1]} : vector<4x16xf32> to vector<4x15xf32>
    %24 = vector.extract_strided_slice %21 {offsets = [0, 0], sizes = [4, 1], strides = [1, 1]} : vector<4x16xf32> to vector<4x1xf32>
    %25 = tpu.concatenate %23, %24 in 1 : vector<4x15xf32>, vector<4x1xf32> -> vector<4x16xf32>
    %c-1_i32 = arith.constant -1 : i32
    %26 = vector.broadcast %c-1_i32 : i32 to vector<1x16xi32>
    %27 = arith.cmpi sge, %10, %26 : vector<1x16xi32>
    %c15_i32 = arith.constant 15 : i32
    %28 = vector.broadcast %c15_i32 : i32 to vector<1x16xi32>
    %29 = arith.cmpi slt, %10, %28 : vector<1x16xi32>
    %30 = arith.andi %27, %29 : vector<1x16xi1>
    %cst_14 = arith.constant 0.000000e+00 : f32
    %31 = vector.shape_cast %30 : vector<1x16xi1> to vector<1x16xi1>
    %32 = vector.broadcast %31 : vector<1x16xi1> to vector<4x16xi1>
    %33 = vector.broadcast %cst_14 : f32 to vector<4x16xf32>
    %34 = arith.select %32, %25, %33 : vector<4x16xi1>, vector<4x16xf32>
    %35 = vector.extract_strided_slice %7 {offsets = [0, 0, 0], sizes = [1, 8, 4], strides = [1, 1, 1]} : vector<3x8x4xf32> to vector<1x8x4xf32>
    %36 = vector.shape_cast %35 : vector<1x8x4xf32> to vector<8x4xf32>
    %cst_15 = arith.constant dense<0.000000e+00> : vector<8x16xf32>
    %37 = tpu.matmul %36, %34, %cst_15 {dimension_numbers = #tpu.dot_dimension_numbers<[1], [0], [0], [1], [0, 0, 1, 1], [], []>} : vector<8x4xf32>, vector<4x16xf32>, vector<8x16xf32> -> vector<8x16xf32>
    %38 = arith.addf %22, %37 : vector<8x16xf32>
    %39 = vector.extract_strided_slice %7 {offsets = [1, 0, 0], sizes = [1, 8, 4], strides = [1, 1, 1]} : vector<3x8x4xf32> to vector<1x8x4xf32>
    %40 = vector.shape_cast %39 : vector<1x8x4xf32> to vector<8x4xf32>
    %cst_16 = arith.constant dense<0.000000e+00> : vector<8x16xf32>
    %41 = tpu.matmul %40, %21, %cst_16 {dimension_numbers = #tpu.dot_dimension_numbers<[1], [0], [0], [1], [0, 0, 1, 1], [], []>} : vector<8x4xf32>, vector<4x16xf32>, vector<8x16xf32> -> vector<8x16xf32>
    %42 = arith.addf %38, %41 : vector<8x16xf32>
    %43 = vector.extract_strided_slice %21 {offsets = [0, 15], sizes = [4, 1], strides = [1, 1]} : vector<4x16xf32> to vector<4x1xf32>
    %44 = vector.extract_strided_slice %21 {offsets = [0, 0], sizes = [4, 15], strides = [1, 1]} : vector<4x16xf32> to vector<4x15xf32>
    %45 = tpu.concatenate %43, %44 in 1 : vector<4x1xf32>, vector<4x15xf32> -> vector<4x16xf32>
    %c1_i32 = arith.constant 1 : i32
    %46 = vector.broadcast %c1_i32 : i32 to vector<1x16xi32>
    %47 = arith.cmpi sge, %10, %46 : vector<1x16xi32>
    %c17_i32 = arith.constant 17 : i32
    %48 = vector.broadcast %c17_i32 : i32 to vector<1x16xi32>
    %49 = arith.cmpi slt, %10, %48 : vector<1x16xi32>
    %50 = arith.andi %47, %49 : vector<1x16xi1>
    %cst_17 = arith.constant 0.000000e+00 : f32
    %51 = vector.shape_cast %50 : vector<1x16xi1> to vector<1x16xi1>
    %52 = vector.broadcast %51 : vector<1x16xi1> to vector<4x16xi1>
    %53 = vector.broadcast %cst_17 : f32 to vector<4x16xf32>
    %54 = arith.select %52, %45, %53 : vector<4x16xi1>, vector<4x16xf32>
    %55 = vector.extract_strided_slice %7 {offsets = [2, 0, 0], sizes = [1, 8, 4], strides = [1, 1, 1]} : vector<3x8x4xf32> to vector<1x8x4xf32>
    %56 = vector.shape_cast %55 : vector<1x8x4xf32> to vector<8x4xf32>
    %cst_18 = arith.constant dense<0.000000e+00> : vector<8x16xf32>
    %57 = tpu.matmul %56, %54, %cst_18 {dimension_numbers = #tpu.dot_dimension_numbers<[1], [0], [0], [1], [0, 0, 1, 1], [], []>} : vector<8x4xf32>, vector<4x16xf32>, vector<8x16xf32> -> vector<8x16xf32>
    %58 = arith.addf %42, %57 : vector<8x16xf32>
    %59 = vector.broadcast %5 : vector<8x1xf32> to vector<8x16xf32>
    %60 = arith.addf %58, %59 : vector<8x16xf32>
    %61 = vector.broadcast %3 : vector<8x1xf32> to vector<8x16xf32>
    %62 = arith.mulf %60, %61 : vector<8x16xf32>
    %63 = vector.broadcast %4 : vector<8x1xf32> to vector<8x16xf32>
    %64 = arith.addf %62, %63 : vector<8x16xf32>
    %cst_19 = arith.constant 0.000000e+00 : f32
    %65 = vector.broadcast %cst_19 : f32 to vector<8x16xf32>
    %66 = arith.cmpf ogt, %64, %65 : vector<8x16xf32>
    %cst_20 = arith.constant 2.000000e-01 : f32
    %67 = vector.broadcast %cst_20 : f32 to vector<8x16xf32>
    %68 = arith.mulf %67, %64 : vector<8x16xf32>
    %69 = arith.select %66, %64, %68 : vector<8x16xi1>, vector<8x16xf32>
    %cst_21 = arith.constant 0.000000e+00 : f32
    %70 = vector.broadcast %cst_21 : f32 to vector<8x16xf32>
    %71 = vector.extract_strided_slice %69 {offsets = [0, 1], sizes = [8, 15], strides = [1, 1]} : vector<8x16xf32> to vector<8x15xf32>
    %72 = vector.extract_strided_slice %69 {offsets = [0, 0], sizes = [8, 1], strides = [1, 1]} : vector<8x16xf32> to vector<8x1xf32>
    %73 = tpu.concatenate %71, %72 in 1 : vector<8x15xf32>, vector<8x1xf32> -> vector<8x16xf32>
    %c-1_i32_22 = arith.constant -1 : i32
    %74 = vector.broadcast %c-1_i32_22 : i32 to vector<1x16xi32>
    %75 = arith.cmpi sge, %10, %74 : vector<1x16xi32>
    %c15_i32_23 = arith.constant 15 : i32
    %76 = vector.broadcast %c15_i32_23 : i32 to vector<1x16xi32>
    %77 = arith.cmpi slt, %10, %76 : vector<1x16xi32>
    %78 = arith.andi %75, %77 : vector<1x16xi1>
    %cst_24 = arith.constant 0.000000e+00 : f32
    %79 = vector.shape_cast %78 : vector<1x16xi1> to vector<1x16xi1>
    %80 = vector.broadcast %79 : vector<1x16xi1> to vector<8x16xi1>
    %81 = vector.broadcast %cst_24 : f32 to vector<8x16xf32>
    %82 = arith.select %80, %73, %81 : vector<8x16xi1>, vector<8x16xf32>
    %83 = vector.extract_strided_slice %8 {offsets = [0, 0, 0], sizes = [1, 8, 8], strides = [1, 1, 1]} : vector<3x8x8xf32> to vector<1x8x8xf32>
    %84 = vector.shape_cast %83 : vector<1x8x8xf32> to vector<8x8xf32>
    %cst_25 = arith.constant dense<0.000000e+00> : vector<8x16xf32>
    %85 = tpu.matmul %84, %82, %cst_25 {dimension_numbers = #tpu.dot_dimension_numbers<[1], [0], [0], [1], [0, 0, 1, 1], [], []>} : vector<8x8xf32>, vector<8x16xf32>, vector<8x16xf32> -> vector<8x16xf32>
    %86 = arith.addf %70, %85 : vector<8x16xf32>
    %87 = vector.extract_strided_slice %8 {offsets = [1, 0, 0], sizes = [1, 8, 8], strides = [1, 1, 1]} : vector<3x8x8xf32> to vector<1x8x8xf32>
    %88 = vector.shape_cast %87 : vector<1x8x8xf32> to vector<8x8xf32>
    %cst_26 = arith.constant dense<0.000000e+00> : vector<8x16xf32>
    %89 = tpu.matmul %88, %69, %cst_26 {dimension_numbers = #tpu.dot_dimension_numbers<[1], [0], [0], [1], [0, 0, 1, 1], [], []>} : vector<8x8xf32>, vector<8x16xf32>, vector<8x16xf32> -> vector<8x16xf32>
    %90 = arith.addf %86, %89 : vector<8x16xf32>
    %91 = vector.extract_strided_slice %69 {offsets = [0, 15], sizes = [8, 1], strides = [1, 1]} : vector<8x16xf32> to vector<8x1xf32>
    %92 = vector.extract_strided_slice %69 {offsets = [0, 0], sizes = [8, 15], strides = [1, 1]} : vector<8x16xf32> to vector<8x15xf32>
    %93 = tpu.concatenate %91, %92 in 1 : vector<8x1xf32>, vector<8x15xf32> -> vector<8x16xf32>
    %c1_i32_27 = arith.constant 1 : i32
    %94 = vector.broadcast %c1_i32_27 : i32 to vector<1x16xi32>
    %95 = arith.cmpi sge, %10, %94 : vector<1x16xi32>
    %c17_i32_28 = arith.constant 17 : i32
    %96 = vector.broadcast %c17_i32_28 : i32 to vector<1x16xi32>
    %97 = arith.cmpi slt, %10, %96 : vector<1x16xi32>
    %98 = arith.andi %95, %97 : vector<1x16xi1>
    %cst_29 = arith.constant 0.000000e+00 : f32
    %99 = vector.shape_cast %98 : vector<1x16xi1> to vector<1x16xi1>
    %100 = vector.broadcast %99 : vector<1x16xi1> to vector<8x16xi1>
    %101 = vector.broadcast %cst_29 : f32 to vector<8x16xf32>
    %102 = arith.select %100, %93, %101 : vector<8x16xi1>, vector<8x16xf32>
    %103 = vector.extract_strided_slice %8 {offsets = [2, 0, 0], sizes = [1, 8, 8], strides = [1, 1, 1]} : vector<3x8x8xf32> to vector<1x8x8xf32>
    %104 = vector.shape_cast %103 : vector<1x8x8xf32> to vector<8x8xf32>
    %cst_30 = arith.constant dense<0.000000e+00> : vector<8x16xf32>
    %105 = tpu.matmul %104, %102, %cst_30 {dimension_numbers = #tpu.dot_dimension_numbers<[1], [0], [0], [1], [0, 0, 1, 1], [], []>} : vector<8x8xf32>, vector<8x16xf32>, vector<8x16xf32> -> vector<8x16xf32>
    %106 = arith.addf %90, %105 : vector<8x16xf32>
    %cst_31 = arith.constant dense<0.000000e+00> : vector<8x16xf32>
    %107 = tpu.matmul %9, %12, %cst_31 {dimension_numbers = #tpu.dot_dimension_numbers<[1], [0], [0], [1], [0, 0, 1, 1], [], []>} : vector<8x4xf32>, vector<4x16xf32>, vector<8x16xf32> -> vector<8x16xf32>
    %108 = arith.addf %106, %107 : vector<8x16xf32>
    %109 = vector.broadcast %6 : vector<8x1xf32> to vector<8x16xf32>
    %110 = arith.addf %108, %109 : vector<8x16xf32>
    %cst_32 = arith.constant 0.000000e+00 : f32
    %111 = vector.broadcast %cst_32 : f32 to vector<8x16xf32>
    %112 = arith.cmpf ogt, %110, %111 : vector<8x16xf32>
    %cst_33 = arith.constant 2.000000e-01 : f32
    %113 = vector.broadcast %cst_33 : f32 to vector<8x16xf32>
    %114 = arith.mulf %113, %110 : vector<8x16xf32>
    %115 = arith.select %112, %110, %114 : vector<8x16xi1>, vector<8x16xf32>
    %c0_34 = arith.constant 0 : index
    %c0_35 = arith.constant 0 : index
    %c0_36 = arith.constant 0 : index
    %116 = vector.load %arg6[%c0_34, %c0_35, %c0_36] : memref<1x8x16xf32, #tpu.memory_space<vmem>>, vector<1x8x16xf32>
    %117 = vector.shape_cast %116 : vector<1x8x16xf32> to vector<8x16xf32>
    %118 = vector.shape_cast %115 : vector<8x16xf32> to vector<1x8x16xf32>
    tpu.vector_store %arg6[%c0_34, %c0_35, %c0_36], %118 {strides = array<i32>} : memref<1x8x16xf32, #tpu.memory_space<vmem>>, vector<1x8x16xf32>,
    return
  }
  func.func @transform_0(%arg0: i32) -> (i32, i32, i32) {
    %c0_i32 = arith.constant 0 : i32
    %c0_i32_0 = arith.constant 0 : i32
    %c0_i32_1 = arith.constant 0 : i32
    return %arg0, %c0_i32, %c0_i32_0 : i32, i32, i32
  }
  func.func @transform_1(%arg0: i32) -> (i32, i32) {
    %c0_i32 = arith.constant 0 : i32
    %c0_i32_0 = arith.constant 0 : i32
    %c0_i32_1 = arith.constant 0 : i32
    return %c0_i32, %c0_i32_0 : i32, i32
  }
  func.func @transform_2(%arg0: i32) -> (i32, i32, i32) {
    %c0_i32 = arith.constant 0 : i32
    %c0_i32_0 = arith.constant 0 : i32
    %c0_i32_1 = arith.constant 0 : i32
    %c0_i32_2 = arith.constant 0 : i32
    return %c0_i32, %c0_i32_0, %c0_i32_1 : i32, i32, i32
  }
  func.func @transform_3(%arg0: i32) -> (i32, i32, i32) {
    %c0_i32 = arith.constant 0 : i32
    %c0_i32_0 = arith.constant 0 : i32
    %c0_i32_1 = arith.constant 0 : i32
    %c0_i32_2 = arith.constant 0 : i32
    return %c0_i32, %c0_i32_0, %c0_i32_1 : i32, i32, i32
  }
  func.func @transform_4(%arg0: i32) -> (i32, i32) {
    %c0_i32 = arith.constant 0 : i32
    %c0_i32_0 = arith.constant 0 : i32
    %c0_i32_1 = arith.constant 0 : i32
    return %c0_i32, %c0_i32_0 : i32, i32
  }
  func.func @transform_5(%arg0: i32) -> (i32, i32, i32) {
    %c0_i32 = arith.constant 0 : i32
    %c0_i32_0 = arith.constant 0 : i32
    %c0_i32_1 = arith.constant 0 : i32
    return %arg0, %c0_i32, %c0_i32_0 : i32, i32, i32
  }
}

</mosaic_0001>

<llo_original>
// kernel: tpu_custom_call.1
$region0: #{tpu_custom_call.1}
  #allocation0 [shape = 'u32[]', space=smem, size = 0x4, offset = 0x4, fixed_abs, tag = 'smem constant byte address 0x4 - core index']
  #allocation1 [shape = 'u32[72,128]{1,0:T(1,128)}', space=vmem, size = 0x9000, scoped, tag = 'internal scratch']
  %s0 = inlined_call_operand.vmem [shape: f32[2,4,16], index: 0, kind: input, shape index: {}]
  %s1 = inlined_call_operand.hbm [shape: f32[8,6], index: 1, kind: input, shape index: {}]
  %s2 = inlined_call_operand.vmem [shape: f32[3,8,4], index: 2, kind: input, shape index: {}]
  %s3 = inlined_call_operand.vmem [shape: f32[3,8,8], index: 3, kind: input, shape index: {}]
  %s4 = inlined_call_operand.vmem [shape: f32[8,4], index: 4, kind: input, shape index: {}]
  %s5 = inlined_call_operand.hbm [shape: f32[2,8,16], index: 5, kind: output, shape index: {}]
  %s6 = sld [smem:[#allocation0]]
  $region57: #{tpu_custom_call.1} parent=0
    _
  %s8 = ssub.s32 1, %s6
  %s9 = scalar_select 0, %s8, %s6
  $region1: #{tpu_custom_call.1} parent=0
    #allocation2 [shape = 'u8[4096]{0}', space=vmem, size = 0x1000, scoped, tag = 'input window, operand 1, single buffered']
    #allocation3 [shape = 's32[2]{0}', space=sflag, size = 0x8, scoped, tag = 'scoped memory for tpu_custom_call.1']
    #allocation4 [shape = 's32[2]{0}', space=sflag, size = 0x8, scoped, tag = 'scoped memory for tpu_custom_call.1']
    #allocation5 [shape = 'u8[8192]{0}', space=vmem, size = 0x2000, scoped, tag = 'output window, operand 0']
    %10 = vsyncpa [#allocation3], 0
    %11 = vsyncpa [#allocation4], 0
    %s12 = scalar_lea.sflag [#allocation4], 1
    %13 = vsyncpa %s12, 0
    loop: start=0, step=1, limit=4
    $region2: #{tpu_custom_call.1} parent=1 // loop_pre_header
      _
    $region3: #{tpu_custom_call.1} parent=1 // loop_header
      %s15 = sphi 0, %s19
      %p16 = scmp.ge.s32.totalorder %s15, 4
      %s25 = sphi 0, %s27
      %s28 = sphi 0, %s25
      %s29 = sphi 0, %s28
      %s45 = sphi 0, %s29
      %s49 = sphi 0, %s49
      %s51 = sphi 0, %s49
      %s52 = sphi 0, %s51
      %s66 = sphi 0, %s52
      %s70 = sphi 0, %s70
      %s72 = sphi 0, %s70
      %s73 = sphi 0, %s72
      %s87 = sphi 0, %s73
      %s91 = sphi 0, %s91
      %s93 = sphi 0, %s91
      %s94 = sphi 0, %s93
      %s108 = sphi 0, %s94
      %s112 = sphi 0, %s112
      %s114 = sphi 0, %s112
      %s115 = sphi 0, %s114
      %s129 = sphi 0, %s115
      %s135 = sphi 0, %s137
      %s138 = sphi 0, %s135
      %s139 = sphi 0, %s138
      %s155 = sphi 0, %s139
    $region4: #{tpu_custom_call.1} parent=1 // loop_header_branch
      %18 = sbr.rel (%p16) target = $region8
    $region5: #{tpu_custom_call.1} parent=1 // loop_body
      %s20 = ssub.s32 %s15, 1
      %s21 = ssub.s32 %s15, 2
      %s22 = sadd.s32 %s15, 1
      %s23 = ssub.s32 %s15, %s22
      %p24 = scmp.eq.s32.totalorder %s23, 0
      %s26 = sadd.s32 %s25, 1
      %s27 = scalar_select %p24, %s25, %s26
      %p30 = pneg %p24
      %p31 = scmp.eq.s32.totalorder %s15, 1
      %p32 = por %p30, %p31
      %p33 = scmp.ne.s32.totalorder %s25, %s28
      %p34 = scmp.eq.s32.totalorder %s15, 0
      %p35 = por %p33, %p34
      %p36 = scmp.ne.s32.totalorder %s25, %s28
      %p37 = scmp.eq.s32.totalorder %s20, 1
      %p38 = por %p36, %p37
      %p39 = scmp.ne.s32.totalorder %s28, %s29
      %p40 = scmp.eq.s32.totalorder %s20, 0
      %p41 = por %p39, %p40
      %p42 = scmp.ne.s32.totalorder %s28, %s29
      %p43 = scmp.eq.s32.totalorder %s21, 1
      %p44 = por %p42, %p43
      %p46 = scmp.ne.s32.totalorder %s29, %s45
      %p47 = scmp.eq.s32.totalorder %s21, 0
      %p48 = por %p46, %p47
      %s50 = sadd.s32 %s49, 1
      %p53 = scmp.eq.s32.totalorder %s15, 1
      %p54 = scmp.ne.s32.totalorder %s49, %s51
      %p55 = scmp.eq.s32.totalorder %s15, 0
      %p56 = por %p54, %p55
      %p57 = scmp.ne.s32.totalorder %s49, %s51
      %p58 = scmp.eq.s32.totalorder %s20, 1
      %p59 = por %p57, %p58
      %p60 = scmp.ne.s32.totalorder %s51, %s52
      %p61 = scmp.eq.s32.totalorder %s20, 0
      %p62 = por %p60, %p61
      %p63 = scmp.ne.s32.totalorder %s51, %s52
      %p64 = scmp.eq.s32.totalorder %s21, 1
      %p65 = por %p63, %p64
      %p67 = scmp.ne.s32.totalorder %s52, %s66
      %p68 = scmp.eq.s32.totalorder %s21, 0
      %p69 = por %p67, %p68
      %s71 = sadd.s32 %s70, 1
      %p74 = scmp.eq.s32.totalorder %s15, 1
      %p75 = scmp.ne.s32.totalorder %s70, %s72
      %p76 = scmp.eq.s32.totalorder %s15, 0
      %p77 = por %p75, %p76
      %p78 = scmp.ne.s32.totalorder %s70, %s72
      %p79 = scmp.eq.s32.totalorder %s20, 1
      %p80 = por %p78, %p79
      %p81 = scmp.ne.s32.totalorder %s72, %s73
      %p82 = scmp.eq.s32.totalorder %s20, 0
      %p83 = por %p81, %p82
      %p84 = scmp.ne.s32.totalorder %s72, %s73
      %p85 = scmp.eq.s32.totalorder %s21, 1
      %p86 = por %p84, %p85
      %p88 = scmp.ne.s32.totalorder %s73, %s87
      %p89 = scmp.eq.s32.totalorder %s21, 0
      %p90 = por %p88, %p89
      %s92 = sadd.s32 %s91, 1
      %p95 = scmp.eq.s32.totalorder %s15, 1
      %p96 = scmp.ne.s32.totalorder %s91, %s93
      %p97 = scmp.eq.s32.totalorder %s15, 0
      %p98 = por %p96, %p97
      %p99 = scmp.ne.s32.totalorder %s91, %s93
      %p100 = scmp.eq.s32.totalorder %s20, 1
      %p101 = por %p99, %p100
      %p102 = scmp.ne.s32.totalorder %s93, %s94
      %p103 = scmp.eq.s32.totalorder %s20, 0
      %p104 = por %p102, %p103
      %p105 = scmp.ne.s32.totalorder %s93, %s94
      %p106 = scmp.eq.s32.totalorder %s21, 1
      %p107 = por %p105, %p106
      %p109 = scmp.ne.s32.totalorder %s94, %s108
      %p110 = scmp.eq.s32.totalorder %s21, 0
      %p111 = por %p109, %p110
      %s113 = sadd.s32 %s112, 1
      %p116 = scmp.eq.s32.totalorder %s15, 1
      %p117 = scmp.ne.s32.totalorder %s112, %s114
      %p118 = scmp.eq.s32.totalorder %s15, 0
      %p119 = por %p117, %p118
      %p120 = scmp.ne.s32.totalorder %s112, %s114
      %p121 = scmp.eq.s32.totalorder %s20, 1
      %p122 = por %p120, %p121
      %p123 = scmp.ne.s32.totalorder %s114, %s115
      %p124 = scmp.eq.s32.totalorder %s20, 0
      %p125 = por %p123, %p124
      %p126 = scmp.ne.s32.totalorder %s114, %s115
      %p127 = scmp.eq.s32.totalorder %s21, 1
      %p128 = por %p126, %p127
      %p130 = scmp.ne.s32.totalorder %s115, %s129
      %p131 = scmp.eq.s32.totalorder %s21, 0
      %p132 = por %p130, %p131
      %s133 = ssub.s32 %s15, %s22
      %p134 = scmp.eq.s32.totalorder %s133, 0
      %s136 = sadd.s32 %s135, 1
      %s137 = scalar_select %p134, %s135, %s136
      %p140 = pneg %p134
      %p141 = scmp.eq.s32.totalorder %s15, 1
      %p142 = por %p140, %p141
      %p143 = scmp.ne.s32.totalorder %s135, %s138
      %p144 = scmp.eq.s32.totalorder %s15, 0
      %p145 = por %p143, %p144
      %p146 = scmp.ne.s32.totalorder %s135, %s138
      %p147 = scmp.eq.s32.totalorder %s20, 1
      %p148 = por %p146, %p147
      %p149 = scmp.ne.s32.totalorder %s138, %s139
      %p150 = scmp.eq.s32.totalorder %s20, 0
      %p151 = por %p149, %p150
      %p152 = scmp.ne.s32.totalorder %s138, %s139
      %p153 = scmp.eq.s32.totalorder %s21, 1
      %p154 = por %p152, %p153
      %p156 = scmp.ne.s32.totalorder %s139, %s155
      %p157 = scmp.eq.s32.totalorder %s21, 0
      %p158 = por %p156, %p157
      %p159 = scmp.le.s32.totalorder 1, %s15
      %p160 = scmp.lt.s32.totalorder %s15, 3
      %p161 = pnand %p159, %p160
      %p162 = pneg %p161
      // Predicated region
      $region9: #{tpu_custom_call.1} parent=5 // pred_check
        _
      $region10: #{tpu_custom_call.1} parent=5 // pred_check_branch
        %164 = sbr.rel (%p161) target = $region12
      $region11: #{tpu_custom_call.1} parent=5 // pred_region
        %s165 = ssub.s32 %s15, 1
        // Predicated region
        $region13: #{tpu_custom_call.1} parent=11 // pred_check
          %p166 = pneg %p62
        $region14: #{tpu_custom_call.1} parent=11 // pred_check_branch
          %168 = sbr.rel (%p166) target = $region16
        $region15: #{tpu_custom_call.1} parent=11 // pred_region
          %170 = vsyncadd [#allocation3], 0
          %s172 = sshll.u32 %s1, 4
          %s173 = int_to_ptr.hbm [resolvable:$true] %s172
          %s174 = sshll.u32 [#allocation2], 4
          %s175 = int_to_ptr.vmem [resolvable:$true] %s174
          %177 = dma.hbm_to_vmem [thread:$0]  %s173, 128, %s175, [#allocation3]
        $region16: #{tpu_custom_call.1} parent=11 // pred_fallthru
          _
        // Predicated region
        $region17: #{tpu_custom_call.1} parent=11 // pred_check
          %p178 = pneg %p83
        $region18: #{tpu_custom_call.1} parent=11 // pred_check_branch
          %180 = sbr.rel (%p178) target = $region20
        $region19: #{tpu_custom_call.1} parent=11 // pred_region
          _
        $region20: #{tpu_custom_call.1} parent=11 // pred_fallthru
          _
        // Predicated region
        $region21: #{tpu_custom_call.1} parent=11 // pred_check
          %p181 = pneg %p104
        $region22: #{tpu_custom_call.1} parent=11 // pred_check_branch
          %183 = sbr.rel (%p181) target = $region24
        $region23: #{tpu_custom_call.1} parent=11 // pred_region
          _
        $region24: #{tpu_custom_call.1} parent=11 // pred_fallthru
          _
        // Predicated region
        $region25: #{tpu_custom_call.1} parent=11 // pred_check
          %p184 = pneg %p125
        $region26: #{tpu_custom_call.1} parent=11 // pred_check_branch
          %186 = sbr.rel (%p184) target = $region28
        $region27: #{tpu_custom_call.1} parent=11 // pred_region
          _
        $region28: #{tpu_custom_call.1} parent=11 // pred_fallthru
          _
      $region12: #{tpu_custom_call.1} parent=5 // pred_fallthru
        _
      %p187 = scmp.lt.s32.totalorder %s15, 2
      // Predicated region
      $region29: #{tpu_custom_call.1} parent=5 // pred_check
        %p188 = pneg %p187
      $region30: #{tpu_custom_call.1} parent=5 // pred_check_branch
        %190 = sbr.rel (%p188) target = $region32
      $region31: #{tpu_custom_call.1} parent=5 // pred_region
        // Predicated region
        $region33: #{tpu_custom_call.1} parent=31 // pred_check
          %p191 = pneg %p35
        $region34: #{tpu_custom_call.1} parent=31 // pred_check_branch
          %193 = sbr.rel (%p191) target = $region36
        $region35: #{tpu_custom_call.1} parent=31 // pred_region
          %p194 = scmp.lt.s32.totalorder %s15, 1
          %s195 = scalar_select %p194, %s15, 1
          %s196 = smul.addr %s195, 4
          %s197 = scalar_lea.vmem %s0, %s196
        $region36: #{tpu_custom_call.1} parent=31 // pred_fallthru
          _
      $region32: #{tpu_custom_call.1} parent=5 // pred_fallthru
        _
      %p198 = scmp.le.s32.totalorder 1, %s15
      %p199 = scmp.lt.s32.totalorder %s15, 3
      %p200 = pnand %p198, %p199
      %p201 = pneg %p200
      // Predicated region
      $region37: #{tpu_custom_call.1} parent=5 // pred_check
        _
      $region38: #{tpu_custom_call.1} parent=5 // pred_check_branch
        %203 = sbr.rel (%p200) target = $region40
      $region39: #{tpu_custom_call.1} parent=5 // pred_region
        %s204 = ssub.s32 %s15, 1
        // Predicated region
        $region41: #{tpu_custom_call.1} parent=39 // pred_check
          %p205 = pneg %p62
        $region42: #{tpu_custom_call.1} parent=39 // pred_check_branch
          %207 = sbr.rel (%p205) target = $region44
        $region43: #{tpu_custom_call.1} parent=39 // pred_region
          %209 = dma.done [#allocation3], 128
        $region44: #{tpu_custom_call.1} parent=39 // pred_fallthru
          _
        %p210 = scmp.lt.s32.totalorder %s20, 1
        %s211 = scalar_select %p210, %s20, 1
        %s212 = smul.addr %s211, 4
        %s213 = scalar_lea.vmem %s0, %s212
        %p214 = pneg %p41
        %p215 = pneg %p38
        %p216 = pneg %p62
        %p217 = pneg %p59
        %p218 = pneg %p83
        %p219 = pneg %p80
        %p220 = pneg %p104
        %p221 = pneg %p101
        %p222 = pneg %p125
        %p223 = pneg %p122
        %p224 = pneg %p151
        %p225 = pneg %p148
        %s226 = sand.u32 %s138, 1
        %s227 = scalar_lea.sflag [#allocation4], %s226
        %s228 = sand.u32 %s138, 1
        %s229 = smul.addr %s228, 8
        %s230 = scalar_lea.vmem [#allocation5], %s229
        %p231 = scmp.lt.s32.totalorder %s20, 1
        %s232 = scalar_select %p231, %s20, 1
        %s233 = smul.addr %s232, 4
        %s234 = scalar_lea.vmem %s0, %s233
        %v235 = vld [vmem:[#allocation2] sm:$0xff]
        %v236 = vld [vmem:[%s2] sm:$0xff]
        %v237 = vld [vmem:[%s2 + $0x8] sm:$0xff]
        %v238 = vld [vmem:[%s2 + $0x10] sm:$0xff]
        %v239 = vld [vmem:[%s3] sm:$0xff]
        %v240 = vld [vmem:[%s3 + $0x8] sm:$0xff]
        %v241 = vld [vmem:[%s3 + $0x10] sm:$0xff]
        %v242 = vld [vmem:[%s4] sm:$0xff]
        %v243 = vlaneseq
        %v244 = vand.u32 %v243, 127
        %v245 = vld [vmem:[%s234] sm:$0xf]
        %247 = vset.pattern.permute.xlu0 0
        %248 = vperm.xlu0 %247, %v235
        %v249 = vpop.permute.xlu0 %248
        %v251 = vmul.f32 %v245, %v249
        %252 = vset.pattern.permute.xlu0 1
        %253 = vperm.xlu0 %252, %v235
        %v254 = vpop.permute.xlu0 %253
        %v256 = vadd.f32 %v251, %v254
        %vm257 = vcmp.gt.f32.partialorder %v256, 0.0
        %v258 = vmul.f32 %v256, 0.2
        %v259 = vsel %vm257, %v256, %v258
        %261 = vrot.lane.b32.xlu0 %v259, 127
        %v262 = vpop.permute.xlu0 %261
        %264 = vrot.lane.b32.xlu0 %v259, 15
        %v265 = vpop.permute.xlu0 %264
        %vm267 = vcmask 121856
        %v268 = vsel %vm267, %v262, %v265
        %vm269 = vcmp.ge.s32.totalorder %v244, 4294967295
        %vm270 = vcmp.lt.s32.totalorder %v244, 15
        %vm271 = vmand %vm269, %vm270
        %v272 = vsel %vm271, 1, 0
        %vm273 = vcmp.eq.s32.totalorder %v272, 1
        %v274 = vsel %vm273, %v268, 0.0
        %vm275 = vcmask 31744
        %v277 = vsel %vm275, %v237, 0
        %vm279 = vcmask 1043456
        %v280 = vsel %vm279, %v259, 0
        %282 = vmatpush.msra.mxu0 0.0
        %283 = vmatpush.msra.mxu0 0.0
        %284 = vmatpush.msra.mxu0 0.0
        %285 = vmatpush.msra.mxu0 0.0
        %286 = vmatpush.msra.mxu0 0.0
        %287 = vmatpush.msra.mxu0 0.0
        %288 = vmatpush.msra.mxu0 0.0
        %289 = vmatpush.msra.mxu0 0.0
        %290 = vmatpush.msra.mxu0 0.0
        %291 = vmatpush.msra.mxu0 0.0
        %292 = vmatpush.msra.mxu0 0.0
        %293 = vmatpush.msra.mxu0 0.0
        %294 = vmatpush.msra.mxu0 0.0
        %295 = vmatpush.msra.mxu0 0.0
        %296 = vmatpush.msra.mxu0 0.0
        %297 = vmatpush.msra.mxu0 %v280
        %298 = vmatmul.f32.gmra.mxu0 %v277
        %v299 = vpop.f32.mrf.mxu0
        %v300 = vadd.f32 0.0, %v299
        %301 = vdwg.mxu0
        %v303 = vsel %vm275, %v236, 0
        %v306 = vsel %vm279, %v274, 0
        %308 = vmatpush.msra.mxu0 0.0
        %309 = vmatpush.msra.mxu0 0.0
        %310 = vmatpush.msra.mxu0 0.0
        %311 = vmatpush.msra.mxu0 0.0
        %312 = vmatpush.msra.mxu0 0.0
        %313 = vmatpush.msra.mxu0 0.0
        %314 = vmatpush.msra.mxu0 0.0
        %315 = vmatpush.msra.mxu0 0.0
        %316 = vmatpush.msra.mxu0 0.0
        %317 = vmatpush.msra.mxu0 0.0
        %318 = vmatpush.msra.mxu0 0.0
        %319 = vmatpush.msra.mxu0 0.0
        %320 = vmatpush.msra.mxu0 0.0
        %321 = vmatpush.msra.mxu0 0.0
        %322 = vmatpush.msra.mxu0 0.0
        %323 = vmatpush.msra.mxu0 %v306
        %324 = vmatmul.f32.gmra.mxu0 %v303
        %v325 = vpop.f32.mrf.mxu0
        %v326 = vadd.f32 %v300, %v325
        %327 = vdwg.mxu0
        %328 = vrot.lane.b32.xlu0 %v259, 113
        %v329 = vpop.permute.xlu0 %328
        %331 = vrot.lane.b32.xlu0 %v259, 1
        %v332 = vpop.permute.xlu0 %331
        %vm334 = vcmask 7168
        %v335 = vsel %vm334, %v329, %v332
        %vm336 = vcmp.ge.s32.totalorder %v244, 1
        %vm337 = vcmp.lt.s32.totalorder %v244, 17
        %vm338 = vmand %vm336, %vm337
        %v339 = vsel %vm338, 1, 0
        %vm340 = vcmp.eq.s32.totalorder %v339, 1
        %v341 = vsel %vm340, %v335, 0.0
        %v343 = vsel %vm275, %v238, 0
        %v346 = vsel %vm279, %v341, 0
        %348 = vmatpush.msra.mxu0 0.0
        %349 = vmatpush.msra.mxu0 0.0
        %350 = vmatpush.msra.mxu0 0.0
        %351 = vmatpush.msra.mxu0 0.0
        %352 = vmatpush.msra.mxu0 0.0
        %353 = vmatpush.msra.mxu0 0.0
        %354 = vmatpush.msra.mxu0 0.0
        %355 = vmatpush.msra.mxu0 0.0
        %356 = vmatpush.msra.mxu0 0.0
        %357 = vmatpush.msra.mxu0 0.0
        %358 = vmatpush.msra.mxu0 0.0
        %359 = vmatpush.msra.mxu0 0.0
        %360 = vmatpush.msra.mxu0 0.0
        %361 = vmatpush.msra.mxu0 0.0
        %362 = vmatpush.msra.mxu0 0.0
        %363 = vmatpush.msra.mxu0 %v346
        %364 = vmatmul.f32.gmra.mxu0 %v343
        %v365 = vpop.f32.mrf.mxu0
        %v366 = vadd.f32 0.0, %v365
        %367 = vdwg.mxu0
        %v368 = vadd.f32 %v326, %v366
        %369 = vset.pattern.permute.xlu0 4
        %370 = vperm.xlu0 %369, %v235
        %v371 = vpop.permute.xlu0 %370
        %v373 = vadd.f32 %v368, %v371
        %374 = vset.pattern.permute.xlu0 2
        %375 = vperm.xlu0 %374, %v235
        %v376 = vpop.permute.xlu0 %375
        %v378 = vmul.f32 %v373, %v376
        %379 = vset.pattern.permute.xlu0 3
        %380 = vperm.xlu0 %379, %v235
        %v381 = vpop.permute.xlu0 %380
        %v383 = vadd.f32 %v378, %v381
        %vm384 = vcmp.gt.f32.partialorder %v383, 0.0
        %v385 = vmul.f32 %v383, 0.2
        %v386 = vsel %vm384, %v383, %v385
        %388 = vrot.lane.b32.xlu0 %v386, 127
        %v389 = vpop.permute.xlu0 %388
        %391 = vrot.lane.b32.xlu0 %v386, 15
        %v392 = vpop.permute.xlu0 %391
        %v394 = vsel %vm267, %v389, %v392
        %v395 = vsel %vm273, %v394, 0.0
        %vm396 = vcmask 64512
        %v398 = vsel %vm396, %v240, 0
        %400 = vmatpush.msra.mxu0 0.0
        %401 = vmatpush.msra.mxu0 0.0
        %402 = vmatpush.msra.mxu0 0.0
        %403 = vmatpush.msra.mxu0 0.0
        %404 = vmatpush.msra.mxu0 0.0
        %405 = vmatpush.msra.mxu0 0.0
        %406 = vmatpush.msra.mxu0 0.0
        %407 = vmatpush.msra.mxu0 0.0
        %408 = vmatpush.msra.mxu0 0.0
        %409 = vmatpush.msra.mxu0 0.0
        %410 = vmatpush.msra.mxu0 0.0
        %411 = vmatpush.msra.mxu0 0.0
        %412 = vmatpush.msra.mxu0 0.0
        %413 = vmatpush.msra.mxu0 0.0
        %414 = vmatpush.msra.mxu0 0.0
        %415 = vmatpush.msra.mxu0 %v386
        %416 = vmatmul.f32.gmra.mxu0 %v398
        %v417 = vpop.f32.mrf.mxu0
        %v418 = vadd.f32 0.0, %v417
        %419 = vdwg.mxu0
        %v421 = vsel %vm396, %v239, 0
        %423 = vmatpush.msra.mxu0 0.0
        %424 = vmatpush.msra.mxu0 0.0
        %425 = vmatpush.msra.mxu0 0.0
        %426 = vmatpush.msra.mxu0 0.0
        %427 = vmatpush.msra.mxu0 0.0
        %428 = vmatpush.msra.mxu0 0.0
        %429 = vmatpush.msra.mxu0 0.0
        %430 = vmatpush.msra.mxu0 0.0
        %431 = vmatpush.msra.mxu0 0.0
        %432 = vmatpush.msra.mxu0 0.0
        %433 = vmatpush.msra.mxu0 0.0
        %434 = vmatpush.msra.mxu0 0.0
        %435 = vmatpush.msra.mxu0 0.0
        %436 = vmatpush.msra.mxu0 0.0
        %437 = vmatpush.msra.mxu0 0.0
        %438 = vmatpush.msra.mxu0 %v395
        %439 = vmatmul.f32.gmra.mxu0 %v421
        %v440 = vpop.f32.mrf.mxu0
        %v441 = vadd.f32 %v418, %v440
        %442 = vdwg.mxu0
        %443 = vrot.lane.b32.xlu0 %v386, 113
        %v444 = vpop.permute.xlu0 %443
        %446 = vrot.lane.b32.xlu0 %v386, 1
        %v447 = vpop.permute.xlu0 %446
        %v449 = vsel %vm334, %v444, %v447
        %v450 = vsel %vm340, %v449, 0.0
        %v452 = vsel %vm396, %v241, 0
        %454 = vmatpush.msra.mxu0 0.0
        %455 = vmatpush.msra.mxu0 0.0
        %456 = vmatpush.msra.mxu0 0.0
        %457 = vmatpush.msra.mxu0 0.0
        %458 = vmatpush.msra.mxu0 0.0
        %459 = vmatpush.msra.mxu0 0.0
        %460 = vmatpush.msra.mxu0 0.0
        %461 = vmatpush.msra.mxu0 0.0
        %462 = vmatpush.msra.mxu0 0.0
        %463 = vmatpush.msra.mxu0 0.0
        %464 = vmatpush.msra.mxu0 0.0
        %465 = vmatpush.msra.mxu0 0.0
        %466 = vmatpush.msra.mxu0 0.0
        %467 = vmatpush.msra.mxu0 0.0
        %468 = vmatpush.msra.mxu0 0.0
        %469 = vmatpush.msra.mxu0 %v450
        %470 = vmatmul.f32.gmra.mxu0 %v452
        %v471 = vpop.f32.mrf.mxu0
        %v472 = vadd.f32 0.0, %v471
        %473 = vdwg.mxu0
        %v474 = vadd.f32 %v441, %v472
        %v476 = vsel %vm275, %v242, 0
        %v479 = vsel %vm279, %v245, 0
        %481 = vmatpush.msra.mxu0 0.0
        %482 = vmatpush.msra.mxu0 0.0
        %483 = vmatpush.msra.mxu0 0.0
        %484 = vmatpush.msra.mxu0 0.0
        %485 = vmatpush.msra.mxu0 0.0
        %486 = vmatpush.msra.mxu0 0.0
        %487 = vmatpush.msra.mxu0 0.0
        %488 = vmatpush.msra.mxu0 0.0
        %489 = vmatpush.msra.mxu0 0.0
        %490 = vmatpush.msra.mxu0 0.0
        %491 = vmatpush.msra.mxu0 0.0
        %492 = vmatpush.msra.mxu0 0.0
        %493 = vmatpush.msra.mxu0 0.0
        %494 = vmatpush.msra.mxu0 0.0
        %495 = vmatpush.msra.mxu0 0.0
        %496 = vmatpush.msra.mxu0 %v479
        %497 = vmatmul.f32.gmra.mxu0 %v476
        %v498 = vpop.f32.mrf.mxu0
        %v499 = vadd.f32 0.0, %v498
        %500 = vdwg.mxu0
        %v501 = vadd.f32 %v474, %v499
        %502 = vset.pattern.permute.xlu0 5
        %503 = vperm.xlu0 %502, %v235
        %v504 = vpop.permute.xlu0 %503
        %v506 = vadd.f32 %v501, %v504
        %vm507 = vcmp.gt.f32.partialorder %v506, 0.0
        %v508 = vmul.f32 %v506, 0.2
        %v509 = vsel %vm507, %v506, %v508
        %vm510 = vcmask 130048
        %511 = vst.msk [vmem:[%s230] sm:$0xff] %vm510, %v509
        %s512 = sand.u32 %s138, 1
        %s513 = scalar_lea.sflag [#allocation4], %s512
        %s514 = sand.u32 %s138, 1
        %s515 = smul.addr %s514, 8
        %s516 = scalar_lea.vmem [#allocation5], %s515
        // Predicated region
        $region45: #{tpu_custom_call.1} parent=39 // pred_check
          %p517 = pneg %p148
        $region46: #{tpu_custom_call.1} parent=39 // pred_check_branch
          %519 = sbr.rel (%p517) target = $region48
        $region47: #{tpu_custom_call.1} parent=39 // pred_region
          %521 = vsyncadd %s513, 0
          %s522 = smul.addr %s20, 8
          %s523 = scalar_lea.hbm %s5, %s522
          %s525 = sshll.u32 %s516, 4
          %s526 = int_to_ptr.vmem [resolvable:$true] %s525
          %s527 = sshll.u32 %s523, 4
          %s528 = int_to_ptr.hbm [resolvable:$true] %s527
          %530 = dma.vmem_to_hbm [thread:$0]  %s526, 128, %s528, %s513
        $region48: #{tpu_custom_call.1} parent=39 // pred_fallthru
          _
      $region40: #{tpu_custom_call.1} parent=5 // pred_fallthru
        _
      %p531 = scmp.le.s32.totalorder 2, %s15
      // Predicated region
      $region49: #{tpu_custom_call.1} parent=5 // pred_check
        %p532 = pneg %p531
      $region50: #{tpu_custom_call.1} parent=5 // pred_check_branch
        %534 = sbr.rel (%p532) target = $region52
      $region51: #{tpu_custom_call.1} parent=5 // pred_region
        %s535 = ssub.s32 %s15, 2
        // Predicated region
        $region53: #{tpu_custom_call.1} parent=51 // pred_check
          %p536 = pneg %p154
        $region54: #{tpu_custom_call.1} parent=51 // pred_check_branch
          %538 = sbr.rel (%p536) target = $region56
        $region55: #{tpu_custom_call.1} parent=51 // pred_region
          %s539 = sand.u32 %s139, 1
          %s540 = scalar_lea.sflag [#allocation4], %s539
          %s541 = sand.u32 %s139, 1
          %s542 = smul.addr %s541, 8
          %s543 = scalar_lea.vmem [#allocation5], %s542
          %545 = dma.done %s540, 128
        $region56: #{tpu_custom_call.1} parent=51 // pred_fallthru
          _
      $region52: #{tpu_custom_call.1} parent=5 // pred_fallthru
        _
    $region6: #{tpu_custom_call.1} parent=1 // loop_footer
      %s19 = sadd.s32 1, %s15
    $region7: #{tpu_custom_call.1} parent=1 // loop_footer_branch
      %14 = sbr.rel target = $region3
    $region8: #{tpu_custom_call.1} parent=1 // loop_exit
      _
    %546 = vsyncpa [#allocation3], 1
    %s547 = scalar_lea.sflag [#allocation3], 1
    %548 = vsyncpa %s547, 1
    %549 = vsyncpa [#allocation4], 1
    %s550 = scalar_lea.sflag [#allocation4], 1
    %551 = vsyncpa %s550, 1

</llo_original>
